<compile_context>
chip_gen: v6e
topology: v6e:2x2x1
jax: 0.10.0
libtpu: 0.0.40
codegen_flags: <defaults>
</compile_context>

<pallas_src>
import functools

import jax
import jax.numpy as jnp
from jax import lax
from jax.experimental import pallas as pl
from jax.experimental.pallas import tpu as pltpu


def _focal_loss_kernel(x_ref, t_ref, out_ref, acc_ref, *, gamma, n_total, tile_n):
    # x_ref  : (tile_n, C) logits tile in VMEM (native dtype)
    # t_ref  : (tile_n, 1) i32 target tile in VMEM
    # out_ref: (1, 1) f32 scalar loss (written once, at the last grid step)
    # acc_ref: (1, 1) f32 running sum of picked focal terms (VMEM scratch)
    i = pl.program_id(0)

    @pl.when(i == 0)
    def _init():
        acc_ref[...] = jnp.zeros_like(acc_ref)

    x = x_ref[...].astype(jnp.float32)                              # (tile_n, C)
    tn, c = x.shape

    # --- numerically stable log-sum-exp over the class (lane) axis ---
    m = jnp.max(x, axis=-1, keepdims=True)
    shifted = x - m
    lse = jnp.log(jnp.sum(jnp.exp(shifted), axis=-1, keepdims=True))

    # --- gather the target column FIRST (one-hot select + lane reduce) ---
    tgt = t_ref[...]                                                # (tile_n, 1) int32
    col = lax.broadcasted_iota(jnp.int32, (tn, c), dimension=1)     # (tile_n, C)
    onehot = col == tgt                                             # broadcast (tile_n,1) vs (tile_n,C)
    shifted_t = jnp.sum(jnp.where(onehot, shifted, 0.0), axis=-1, keepdims=True)

    # --- focal math only on the gathered (tile_n, 1) column ---
    lp_t = shifted_t - lse                                          # log p_target
    p_t = jnp.exp(lp_t)
    one_minus_p = 1.0 - p_t
    if float(gamma).is_integer() and gamma >= 0:
        # integer gamma (default 2.0): cheap VPU multiply chain, no pow on the EUP
        factor = jnp.ones_like(one_minus_p)
        for _ in range(int(gamma)):
            factor = factor * one_minus_p
    else:
        factor = one_minus_p ** jnp.float32(gamma)
    mod_t = factor * lp_t                                           # (tile_n, 1)

    # mask padded rows in the (possibly partial) last batch tile
    if n_total % tile_n != 0:
        row = i * tile_n + lax.broadcasted_iota(jnp.int32, (tn, 1), dimension=0)
        mod_t = jnp.where(row < n_total, mod_t, 0.0)

    acc_ref[...] += jnp.sum(mod_t, axis=0, keepdims=True)           # (1, 1)

    @pl.when(i == pl.num_programs(0) - 1)
    def _finalize():
        # reduction='mean', weight=None  =>  -sum(picked) / N (true N, not padded)
        out_ref[...] = -acc_ref[...] / jnp.float32(n_total)


def _choose_tile_n(n, c, itemsize):
    """Pick a batch tile: ~4 MiB per logits block (x2 for double-buffering), sublane-aligned."""
    sub = 16 if itemsize < 4 else 8            # bf16 packs 16 rows per sublane tile
    budget = 4 * 1024 * 1024
    t = max(sub, budget // max(c * itemsize, 1))
    t = min(t, 1024)
    t = (t // sub) * sub
    if t >= n:
        return n                               # single full-extent block
    return t


def focal_loss(logits, targets, gamma=2.0, tile_n=None):
    """logits: (N, C) float32/bfloat16 (native dtype), targets: (N,) int. Returns scalar f32 loss."""
    # TODO(synk): per-class `weight` and `ignore_index` of torch nll_loss not implemented
    #             (module default is weight=None, reduction='mean').
    n, c = logits.shape
    itemsize = jnp.dtype(logits.dtype).itemsize
    if tile_n is None:
        tile_n = _choose_tile_n(n, c, itemsize)
    tile_n = min(tile_n, n)
    if tile_n < n:
        sub = 16 if itemsize < 4 else 8
        tile_n = max(sub, (tile_n // sub) * sub)

    t2d = targets.astype(jnp.int32).reshape(n, 1)
    grid = (pl.cdiv(n, tile_n),)
    kernel = functools.partial(_focal_loss_kernel, gamma=gamma, n_total=n, tile_n=tile_n)

    # keep in-flight double-buffered blocks comfortably inside scoped VMEM on v5e/v6e/v7x
    vmem_limit = int(min(64 << 20, max(32 << 20, 4 * tile_n * (c * itemsize + 4) + (8 << 20))))

    # TODO(synk): v7x-only variant — emit per-tile partial sums with dimension_semantics=("parallel",)
    #             to shard the batch axis over both TensorCores; the accumulator path below is serial.
    out = pl.pallas_call(
        kernel,
        out_shape=jax.ShapeDtypeStruct((1, 1), jnp.float32),
        grid_spec=pltpu.PrefetchScalarGridSpec(
            num_scalar_prefetch=0,
            grid=grid,
            in_specs=[
                pl.BlockSpec((tile_n, c), lambda i: (i, 0)),   # logits tile (native dtype)
                pl.BlockSpec((tile_n, 1), lambda i: (i, 0)),   # targets tile
            ],
            out_specs=pl.BlockSpec((1, 1), lambda i: (0, 0)),  # resident scalar output
            scratch_shapes=[pltpu.VMEM((1, 1), jnp.float32)],  # running-sum accumulator
        ),
        compiler_params=pltpu.CompilerParams(
            dimension_semantics=("arbitrary",),                # accumulator across the grid axis
            vmem_limit_bytes=vmem_limit,
        ),
    )(logits, t2d)                                             # NOTE: no f32 upcast in the wrapper
    return out[0, 0]


def _focal_loss_ref(logits, targets, gamma=2.0):
    log_prob = jax.nn.log_softmax(logits.astype(jnp.float32), axis=-1)
    prob = jnp.exp(log_prob)
    mod = (1.0 - prob) ** gamma * log_prob
    picked = jnp.take_along_axis(mod, targets[:, None].astype(jnp.int32), axis=-1)[:, 0]
    return -jnp.mean(picked)


if __name__ == "__main__":
    key = jax.random.PRNGKey(0)
    k1, k2, k3, k4, k5, k6 = jax.random.split(key, 6)

    # Test 1: small single-block case, f32 logits (batch=8, classes=128).
    N, C = 8, 128
    logits = jax.random.normal(k1, (N, C), dtype=jnp.float32)
    targets = jax.random.randint(k2, (N,), 0, C, dtype=jnp.int32)
    loss = focal_loss(logits, targets, gamma=2.0)
    jax.block_until_ready(loss)
    ref = _focal_loss_ref(logits, targets, gamma=2.0)
    assert jnp.allclose(loss, ref, atol=1e-5, rtol=1e-4), (loss, ref)

    # Test 2: multi-tile grid with a partial (masked) last tile, f32.
    N, C = 100, 128
    logits = jax.random.normal(k3, (N, C), dtype=jnp.float32)
    targets = jax.random.randint(k4, (N,), 0, C, dtype=jnp.int32)
    loss = focal_loss(logits, targets, gamma=2.0, tile_n=32)
    jax.block_until_ready(loss)
    ref = _focal_loss_ref(logits, targets, gamma=2.0)
    assert jnp.allclose(loss, ref, atol=1e-5, rtol=1e-4), (loss, ref)

    # Test 3: native bf16 logits (no wrapper upcast), multi-tile grid.
    N, C = 64, 128
    logits = jax.random.normal(k5, (N, C), dtype=jnp.float32).astype(jnp.bfloat16)
    targets = jax.random.randint(k6, (N,), 0, C, dtype=jnp.int32)
    loss = focal_loss(logits, targets, gamma=2.0, tile_n=16)
    jax.block_until_ready(loss)
    ref = _focal_loss_ref(logits, targets, gamma=2.0)
    assert jnp.allclose(loss, ref, atol=1e-4, rtol=1e-4), (loss, ref)

    print("KERNEL_OK")
</pallas_src>

<mosaic_0001>
module attributes {stable_mosaic.version = 11 : i64} {
  func.func @_focal_loss_kernel(%arg0: i32, %arg1: memref<8x128xf32, #tpu.memory_space<vmem>>, %arg2: memref<8x1xi32, #tpu.memory_space<vmem>>, %arg3: memref<1x1xf32, #tpu.memory_space<vmem>>, %arg4: memref<1x1xf32, #tpu.memory_space<vmem>>) attributes {dimension_semantics = [#tpu.dimension_semantics<arbitrary>], iteration_bounds = array<i64: 1>, scalar_prefetch = 0 : i64, scratch_operands = 1 : i64, tpu.core_type = #tpu.core_type<tc>, window_params = [{transform_indices = @transform_0, window_bounds = array<i64: 8, 128>}, {transform_indices = @transform_1, window_bounds = array<i64: 8, 1>}, {pipeline_mode = #tpu.pipeline_mode<synchronous>, transform_indices = @transform_2, window_bounds = array<i64: 1, 1>}]} {
    %c0_i32 = arith.constant 0 : i32
    %0 = arith.cmpi eq, %arg0, %c0_i32 : i32
    %1 = arith.extui %0 : i1 to i32
    %c0_i32_0 = arith.constant 0 : i32
    %2 = arith.cmpi ne, %1, %c0_i32_0 : i32
    scf.if %2 {
      %cst_16 = arith.constant 0.000000e+00 : f32
      %36 = vector.broadcast %cst_16 : f32 to vector<1x1xf32>
      %c0_17 = arith.constant 0 : index
      %c0_18 = arith.constant 0 : index
      %37 = vector.load %arg4[%c0_17, %c0_18] : memref<1x1xf32, #tpu.memory_space<vmem>>, vector<1x1xf32>
      tpu.vector_store %arg4[%c0_17, %c0_18], %36 {strides = array<i32>} : memref<1x1xf32, #tpu.memory_space<vmem>>, vector<1x1xf32>,
    } else {
    }
    %c0 = arith.constant 0 : index
    %c0_1 = arith.constant 0 : index
    %3 = vector.load %arg1[%c0, %c0_1] : memref<8x128xf32, #tpu.memory_space<vmem>>, vector<8x128xf32>
    %cst = arith.constant dense<0xFF800000> : vector<8xf32>
    %4 = vector.multi_reduction <maximumf>, %3, %cst [1] : vector<8x128xf32> to vector<8xf32>
    %5 = vector.shape_cast %4 : vector<8xf32> to vector<8x1xf32>
    %6 = vector.broadcast %5 : vector<8x1xf32> to vector<8x128xf32>
    %7 = arith.subf %3, %6 : vector<8x128xf32>
    %8 = math.exp %7 : vector<8x128xf32>
    %cst_2 = arith.constant dense<0.000000e+00> : vector<8xf32>
    %9 = vector.multi_reduction <add>, %8, %cst_2 [1] : vector<8x128xf32> to vector<8xf32>
    %10 = vector.shape_cast %9 : vector<8xf32> to vector<8x1xf32>
    %11 = math.log %10 : vector<8x1xf32>
    %c0_3 = arith.constant 0 : index
    %c0_4 = arith.constant 0 : index
    %12 = vector.load %arg2[%c0_3, %c0_4] : memref<8x1xi32, #tpu.memory_space<vmem>>, vector<8x1xi32>
    %13 = tpu.iota {dimensions = array<i32: 1>} : vector<8x128xi32>
    %14 = vector.broadcast %12 : vector<8x1xi32> to vector<8x128xi32>
    %15 = arith.cmpi eq, %13, %14 : vector<8x128xi32>
    %cst_5 = arith.constant 0.000000e+00 : f32
    %16 = vector.broadcast %cst_5 : f32 to vector<8x128xf32>
    %17 = arith.select %15, %7, %16 : vector<8x128xi1>, vector<8x128xf32>
    %cst_6 = arith.constant dense<0.000000e+00> : vector<8xf32>
    %18 = vector.multi_reduction <add>, %17, %cst_6 [1] : vector<8x128xf32> to vector<8xf32>
    %19 = vector.shape_cast %18 : vector<8xf32> to vector<8x1xf32>
    %20 = arith.subf %19, %11 : vector<8x1xf32>
    %21 = math.exp %20 : vector<8x1xf32>
    %cst_7 = arith.constant 1.000000e+00 : f32
    %22 = vector.broadcast %cst_7 : f32 to vector<8x1xf32>
    %23 = arith.subf %22, %21 : vector<8x1xf32>
    %cst_8 = arith.constant 1.000000e+00 : f32
    %24 = vector.broadcast %cst_8 : f32 to vector<8x1xf32>
    %25 = arith.mulf %24, %23 : vector<8x1xf32>
    %26 = arith.mulf %25, %23 : vector<8x1xf32>
    %27 = arith.mulf %26, %20 : vector<8x1xf32>
    %c0_9 = arith.constant 0 : index
    %c0_10 = arith.constant 0 : index
    %28 = vector.load %arg4[%c0_9, %c0_10] : memref<1x1xf32, #tpu.memory_space<vmem>>, vector<1x1xf32>
    %cst_11 = arith.constant dense<0.000000e+00> : vector<1xf32>
    %29 = vector.multi_reduction <add>, %27, %cst_11 [0] : vector<8x1xf32> to vector<1xf32>
    %30 = vector.shape_cast %29 : vector<1xf32> to vector<1x1xf32>
    %31 = arith.addf %28, %30 : vector<1x1xf32>
    %c0_12 = arith.constant 0 : index
    %c0_13 = arith.constant 0 : index
    %32 = vector.load %arg4[%c0_12, %c0_13] : memref<1x1xf32, #tpu.memory_space<vmem>>, vector<1x1xf32>
    tpu.vector_store %arg4[%c0_12, %c0_13], %31 {strides = array<i32>} : memref<1x1xf32, #tpu.memory_space<vmem>>, vector<1x1xf32>,
    %c0_i32_14 = arith.constant 0 : i32
    %33 = arith.cmpi eq, %arg0, %c0_i32_14 : i32
    %34 = arith.extui %33 : i1 to i32
    %c0_i32_15 = arith.constant 0 : i32
    %35 = arith.cmpi ne, %34, %c0_i32_15 : i32
    scf.if %35 {
      %c0_16 = arith.constant 0 : index
      %c0_17 = arith.constant 0 : index
      %36 = vector.load %arg4[%c0_16, %c0_17] : memref<1x1xf32, #tpu.memory_space<vmem>>, vector<1x1xf32>
      %cst_18 = arith.constant 0.000000e+00 : f32
      %37 = vector.broadcast %cst_18 : f32 to vector<1x1xf32>
      %38 = arith.subf %37, %36 : vector<1x1xf32>
      %cst_19 = arith.constant 8.000000e+00 : f32
      %39 = vector.broadcast %cst_19 : f32 to vector<1x1xf32>
      %40 = arith.divf %38, %39 : vector<1x1xf32>
      %c0_20 = arith.constant 0 : index
      %c0_21 = arith.constant 0 : index
      %41 = vector.load %arg3[%c0_20, %c0_21] : memref<1x1xf32, #tpu.memory_space<vmem>>, vector<1x1xf32>
      tpu.vector_store %arg3[%c0_20, %c0_21], %40 {strides = array<i32>} : memref<1x1xf32, #tpu.memory_space<vmem>>, vector<1x1xf32>,
    } else {
    }
    return
  }
  func.func @transform_0(%arg0: i32) -> (i32, i32) {
    %c0_i32 = arith.constant 0 : i32
    %c0_i32_0 = arith.constant 0 : i32
    return %arg0, %c0_i32 : i32, i32
  }
  func.func @transform_1(%arg0: i32) -> (i32, i32) {
    %c0_i32 = arith.constant 0 : i32
    %c0_i32_0 = arith.constant 0 : i32
    return %arg0, %c0_i32 : i32, i32
  }
  func.func @transform_2(%arg0: i32) -> (i32, i32) {
    %c0_i32 = arith.constant 0 : i32
    %c0_i32_0 = arith.constant 0 : i32
    %c0_i32_1 = arith.constant 0 : i32
    return %c0_i32, %c0_i32_0 : i32, i32
  }
}

</mosaic_0001>

<llo_original>
// kernel: tpu_custom_call.1
$region0: #{tpu_custom_call.1}
  #allocation0 [shape = 'u32[]', space=smem, size = 0x4, offset = 0x4, fixed_abs, tag = 'smem constant byte address 0x4 - core index']
  #allocation1 [shape = 'u32[144,128]{1,0:T(1,128)}', space=vmem, size = 0x12000, scoped, tag = 'internal scratch']
  #allocation2 [shape = 'f32[1,1]{1,0:T(1,128)}', space=vmem, size = 0x200, scoped, tag = 'scratch operand']
  %s0 = inlined_call_operand.vmem [shape: f32[8,128], index: 0, kind: input, shape index: {}]
  %s1 = inlined_call_operand.vmem [shape: s32[8,1], index: 1, kind: input, shape index: {}]
  %s2 = inlined_call_operand.hbm [shape: f32[1,1], index: 2, kind: output, shape index: {}]
  %s3 = sld [smem:[#allocation0]]
  $region26: #{tpu_custom_call.1} parent=0
    _
  %s5 = ssub.s32 1, %s3
  %s6 = scalar_select 0, %s5, %s3
  $region1: #{tpu_custom_call.1} parent=0
    #allocation3 [shape = 'u8[512]{0}', space=vmem, size = 0x400, scoped, tag = 'output window, operand 0, single buffered']
    #allocation4 [shape = 's32[1]{0}', space=sflag, size = 0x4, scoped, tag = 'scoped memory for tpu_custom_call.1']
    %7 = vsyncpa [#allocation4], 0
    // Predicated region
    $region2: #{tpu_custom_call.1} parent=1 // pred_check
      _
    $region3: #{tpu_custom_call.1} parent=1 // pred_check_branch
      %9 = sbr.rel (0) target = $region5
    $region4: #{tpu_custom_call.1} parent=1 // pred_region
      _
    $region5: #{tpu_custom_call.1} parent=1 // pred_fallthru
      _
    // Predicated region
    $region6: #{tpu_custom_call.1} parent=1 // pred_check
      _
    $region7: #{tpu_custom_call.1} parent=1 // pred_check_branch
      %11 = sbr.rel (0) target = $region9
    $region8: #{tpu_custom_call.1} parent=1 // pred_region
      _
    $region9: #{tpu_custom_call.1} parent=1 // pred_fallthru
      _
    %p12 = scmp.eq.s32.totalorder 0, 0
    // Predicated region
    $region10: #{tpu_custom_call.1} parent=1 // pred_check
      %p13 = pneg %p12
    $region11: #{tpu_custom_call.1} parent=1 // pred_check_branch
      %15 = sbr.rel (%p13) target = $region13
    $region12: #{tpu_custom_call.1} parent=1 // pred_region
      %vm16 = vcmask 0
      %17 = vst.msk [vmem:[#allocation2] sm:$0x1] %vm16, 0.0
    $region13: #{tpu_custom_call.1} parent=1 // pred_fallthru
      _
    %v18 = vld [vmem:[%s0] sm:$0xff]
    %19 = vmax.xlane.f32.xlu0 %v18
    %v20 = vpop.xlane.xlu0 %19
    %v21 = vsub.f32 %v18, %v20
    %v22 = vmul.f32 %v21, 1.442695
    %v23 = vpow.pop %v22
    %24 = vadd.xlane.f32.xlu0 %v23
    %v25 = vpop.xlane.xlu0 %24
    %v26 = vlog2.pop %v25
    %v27 = vmul.f32 %v26, 0.6931472
    %v28 = vld [vmem:[%s1] sm:$0xff]
    %v29 = vlaneseq
    %v30 = vand.u32 %v29, 127
    %31 = vset.pattern.permute.xlu0 0
    %32 = vperm.xlu0 %31, %v28
    %v33 = vpop.permute.xlu0 %32
    %vm34 = vcmp.eq.s32.totalorder %v30, %v33
    %v35 = vsel %vm34, %v21, 0.0
    %36 = vadd.xlane.f32.xlu0 %v35
    %v37 = vpop.xlane.xlu0 %36
    %v38 = vsub.f32 %v37, %v27
    %v39 = vmul.f32 %v38, 1.442695
    %v40 = vpow.pop %v39
    %v41 = vsub.f32 1.0, %v40
    %v42 = vmul.f32 %v41, %v41
    %v43 = vmul.f32 %v42, %v38
    %v44 = vld [vmem:[#allocation2] sm:$0x1]
    %v45 = vrot.slane %v43, 4
    %v46 = vadd.f32 %v43, %v45
    %v47 = vrot.slane %v46, 2
    %v48 = vadd.f32 %v46, %v47
    %v49 = vrot.slane %v48, 1
    %v50 = vadd.f32 %v48, %v49
    %v51 = vadd.f32 %v44, %v50
    %vm52 = vcmask 0
    %53 = vst.msk [vmem:[#allocation2] sm:$0x1] %vm52, %v51
    // Predicated region
    $region14: #{tpu_custom_call.1} parent=1 // pred_check
      %p54 = pneg %p12
    $region15: #{tpu_custom_call.1} parent=1 // pred_check_branch
      %56 = sbr.rel (%p54) target = $region17
    $region16: #{tpu_custom_call.1} parent=1 // pred_region
      %v57 = vld [vmem:[#allocation2] sm:$0x1]
      %v58 = vsub.f32 0.0, %v57
      %v59 = vrcp.pop 8.0
      %v60 = vmul.f32 %v58, %v59
      %61 = vst.msk [vmem:[#allocation3] sm:$0x1] %vm52, %v60
    $region17: #{tpu_custom_call.1} parent=1 // pred_fallthru
      _
    // Predicated region
    $region18: #{tpu_custom_call.1} parent=1 // pred_check
      _
    $region19: #{tpu_custom_call.1} parent=1 // pred_check_branch
      %63 = sbr.rel (0) target = $region21
    $region20: #{tpu_custom_call.1} parent=1 // pred_region
      %s65 = ssub.s32 16, 16
      %66 = vsyncadd [#allocation4], %s65
      %s68 = sshll.u32 [#allocation3], 4
      %s69 = int_to_ptr.vmem [resolvable:$true] %s68
      %71 = dma.vmem_to_hbm [thread:$0]  %s69, 16, %s2, [#allocation4]
    $region21: #{tpu_custom_call.1} parent=1 // pred_fallthru
      _
    // Predicated region
    $region22: #{tpu_custom_call.1} parent=1 // pred_check
      _
    $region23: #{tpu_custom_call.1} parent=1 // pred_check_branch
      %73 = sbr.rel (0) target = $region25
    $region24: #{tpu_custom_call.1} parent=1 // pred_region
      %74 = dma.done [#allocation4], 16
    $region25: #{tpu_custom_call.1} parent=1 // pred_fallthru
      _
    %75 = vsyncpa [#allocation4], 1

</llo_original>
